<compile_context>
chip_gen: v6e
topology: v6e:2x2x1
jax: 0.10.0
libtpu: 0.0.40
codegen_flags: <defaults>
</compile_context>

<pallas_src>
import numpy as np
import jax
import jax.numpy as jnp
from jax import lax
from jax.experimental import pallas as pl
from jax.experimental.pallas import tpu as pltpu


# --------------------------------------------------------------------------------------
# Kernel
# --------------------------------------------------------------------------------------

def resnet2d_block_kernel(x_ref, t1_ref, t2_ref, b1_ref, b2_ref,
                          out_ref, pad_ref, row_ref):
    """NB images per grid step, flattened (pixel, channel) lane layout.

    x_ref   : (NB, H, LIN)     bf16  input images; lanes [0, W*Cin) hold the NHWC row,
                                     lanes [W*Cin, LIN) are zero.
    t1_ref  : (4*LIN, LIN)     bf16  conv1 row-Toeplitz weight (BN1 folded); rows of
                                     the x lane group and cols >= W*Cin are zero.
    t2_ref  : (4*LIN, LOUT)    bf16  conv2 row-Toeplitz weight (BN2 folded) stacked
                                     with the block-diag 1x1 shortcut weight (BNsc
                                     folded) on the x lane-group rows.
    b1_ref  : (1, LIN)         f32   conv1 bias tiled over pixels (zero pad lanes).
    b2_ref  : (1, LOUT)        f32   conv2 + shortcut biases, fused.
    out_ref : (NB, H, LOUT)    bf16  lane-dense output.
    pad_ref : (NB, H+2, LIN)   f32   per-image zero-halo padded row buffer (x, then h1).
    row_ref : (NB*H, 4*LIN)    bf16  fused matmul LHS: [shift0|shift1|shift2|x] groups.
    """
    NB, H, LIN = x_ref.shape
    LOUT = out_ref.shape[2]
    f32, bf16 = jnp.float32, jnp.bfloat16

    # Zero ONLY the top/bottom halo rows.  Interior rows (1..H) are always fully
    # overwritten below, and the halo *columns* are re-zeroed for free because x and
    # h1 carry zero lanes beyond W*Cin.  Unconditional (not program_id==0-guarded) so
    # it is safe when the parallel grid axis is split across cores with own scratch.
    pad_ref[:, 0:1, :] = jnp.zeros((NB, 1, LIN), f32)
    pad_ref[:, H + 1:H + 2, :] = jnp.zeros((NB, 1, LIN), f32)

    x = x_ref[...]                                   # (NB, H, LIN) bf16
    pad_ref[:, 1:H + 1, :] = x.astype(f32)

    # The raw-x lane group of the fused conv2+shortcut LHS never changes: fill once.
    row_ref[:, 3 * LIN:4 * LIN] = x.reshape(NB * H, LIN)

    def im2row():
        # Three vertically shifted row views of every padded image, laid side by side
        # on the lane axis.  All stores are lane-aligned full-width (H, LIN) vst's.
        for n in range(NB):
            for s in range(3):
                row_ref[n * H:(n + 1) * H, s * LIN:(s + 1) * LIN] = (
                    pad_ref[n, s:s + H, :].astype(bf16))

    # ---- conv1 (3x3, stride 1, pad 1) + folded BN1 + ReLU:
    #      ONE bf16 MXU matmul (M = NB*H) for all images in the block. ----
    im2row()
    h1 = jnp.maximum(
        jnp.dot(row_ref[...], t1_ref[...], preferred_element_type=f32) + b1_ref[...],
        0.0)                                         # (NB*H, LIN); lanes >= W*Cin stay 0
    # (dropout == 0 -> identity)

    # ---- conv2 (3x3) + folded BN2, fused with the 1x1-conv shortcut (+ BNsc):
    #      refill the shifted lane groups with h1, keep the x group, single matmul
    #      (the residual add happens inside the MXU accumulation). ----
    pad_ref[:, 1:H + 1, :] = h1.reshape(NB, H, LIN)
    im2row()
    h2 = jnp.dot(row_ref[...], t2_ref[...], preferred_element_type=f32) + b2_ref[...]

    # ---- final ReLU, lane-dense bf16 store ----
    out_ref[...] = jnp.maximum(h2, 0.0).reshape(NB, H, LOUT).astype(out_ref.dtype)


# --------------------------------------------------------------------------------------
# Host-side weight packing
# --------------------------------------------------------------------------------------

def _round_up(x, m):
    return (x + m - 1) // m * m


def make_row_toeplitz(w_hwio, width, lanes_in, lanes_out):
    """3x3 stride-1 pad-1 conv as one matmul over interior-first padded rows.

    Padded-row lane layout (lanes_in wide, groups of cin lanes):
      group g in [0, width)   -> interior pixel g     (padded pixel g+1)
      group width             -> left  zero halo      (padded pixel 0)
      group width+1           -> right zero halo      (padded pixel width+1)
      groups >= width+2       -> dead zero padding up to lanes_in
    Output lane layout: xo*cout + co for xo in [0, width); zero padding to lanes_out.

    Returns T of shape (3*lanes_in, lanes_out) such that, for the three vertically
    shifted padded-row views L[y] = [row(y) | row(y+1) | row(y+2)], conv_out[y] = L @ T.
    """
    kh, kw, cin, cout = w_hwio.shape
    assert kh == 3 and kw == 3
    assert lanes_in % cin == 0 and lanes_in // cin >= width + 2
    assert lanes_out >= width * cout
    w = np.asarray(w_hwio, np.float32)
    t = np.zeros((3, lanes_in // cin, cin, lanes_out), np.float32)
    for s in range(3):               # kernel row
        for k in range(3):           # kernel col
            for xo in range(width):  # output pixel
                p = xo + k           # padded-pixel index, 0 .. width+1
                if p == 0:
                    g = width        # left halo (data is always zero)
                elif p == width + 1:
                    g = width + 1    # right halo (data is always zero)
                else:
                    g = p - 1        # interior pixel p-1
                t[s, g, :, xo * cout:(xo + 1) * cout] = w[s, k]
    return t.reshape(3 * lanes_in, lanes_out)


# --------------------------------------------------------------------------------------
# Wrapper: NCHW in / NCHW out
# --------------------------------------------------------------------------------------

def resnet2d_block(x_nchw, w1, b1, w2, b2, wsc, bsc):
    """ResNet2DBlock forward (stride=1, shortcut=True, eval-mode BN folded).

    Weights / activations run in bf16 on the MXU with f32 accumulation; the kernel's
    HBM output is bf16 (cast back to f32 here).
    """
    N, Cin, H, W = x_nchw.shape
    Cout = w2.shape[-1]

    LIN = _round_up((W + 2) * Cin, 128)   # padded-row lane width, lane aligned
    LOUT = _round_up(W * Cout, 128)       # output lane width
    assert LIN % Cin == 0
    K = 4 * LIN                           # [3 shifted row views | raw x] lane groups

    # NB images per grid step: largest divisor of N with NB*H <= 256 (MXU height).
    # (On v7x one may prefer capping NB so grid length stays >= 2 for both TCs.)
    nb = 1
    for d in range(1, N + 1):
        if N % d == 0 and d * H <= 256:
            nb = d
    grid = (N // nb,)

    # NHWC, flatten (W, C) onto lanes, zero-pad to LIN lanes, bf16 activations.
    x = jnp.transpose(x_nchw, (0, 2, 3, 1)).reshape(N, H, W * Cin)
    x = jnp.pad(x, ((0, 0), (0, 0), (0, LIN - W * Cin))).astype(jnp.bfloat16)

    # conv1 weight: Toeplitz rows in [0, 3*LIN); zero rows for the x lane group.
    t1 = np.zeros((K, LIN), np.float32)
    t1[:3 * LIN] = make_row_toeplitz(np.asarray(w1), W, LIN, LIN)

    # conv2 weight + 1x1 shortcut weight fused into one RHS (single MXU push).
    t2 = np.zeros((K, LOUT), np.float32)
    t2[:3 * LIN] = make_row_toeplitz(np.asarray(w2), W, LIN, LOUT)
    t2[3 * LIN:3 * LIN + W * Cin, :W * Cout] = np.kron(
        np.eye(W, dtype=np.float32), np.asarray(wsc, np.float32))

    # Biases broadcast over pixels; conv2 + shortcut biases fused into one row.
    b1_l = np.zeros((1, LIN), np.float32)
    b1_l[0, :W * Cin] = np.tile(np.asarray(b1, np.float32), W)
    b2_l = np.zeros((1, LOUT), np.float32)
    b2_l[0, :W * Cout] = np.tile(np.asarray(b2, np.float32) + np.asarray(bsc, np.float32), W)

    out = pl.pallas_call(
        resnet2d_block_kernel,
        out_shape=jax.ShapeDtypeStruct((N, H, LOUT), jnp.bfloat16),
        grid=grid,
        in_specs=[
            pl.BlockSpec((nb, H, LIN), lambda i: (i, 0, 0)),
            pl.BlockSpec((K, LIN), lambda i: (0, 0)),
            pl.BlockSpec((K, LOUT), lambda i: (0, 0)),
            pl.BlockSpec((1, LIN), lambda i: (0, 0)),
            pl.BlockSpec((1, LOUT), lambda i: (0, 0)),
        ],
        out_specs=pl.BlockSpec((nb, H, LOUT), lambda i: (i, 0, 0)),
        scratch_shapes=[
            pltpu.VMEM((nb, H + 2, LIN), jnp.float32),    # zero-halo padded buffers
            pltpu.VMEM((nb * H, K), jnp.bfloat16),        # fused im2row + x matmul LHS
        ],
        compiler_params=pltpu.CompilerParams(dimension_semantics=("parallel",)),
    )(x,
      jnp.asarray(t1).astype(jnp.bfloat16),
      jnp.asarray(t2).astype(jnp.bfloat16),
      jnp.asarray(b1_l),
      jnp.asarray(b2_l))

    out = out.astype(jnp.float32)[:, :, :W * Cout].reshape(N, H, W, Cout)
    return jnp.transpose(out, (0, 3, 1, 2))          # back to NCHW


# --------------------------------------------------------------------------------------
# Deterministic synthetic parameters (eval-mode BN folded into the convs)
# --------------------------------------------------------------------------------------

def fold_bn(w_hwio, b_conv, gamma, beta, mean, var, eps=1e-5):
    g = gamma / jnp.sqrt(var + eps)                 # (Cout,)
    return w_hwio * g, b_conv * g + (beta - mean * g)


def make_params(key, cin, cout):
    ks = jax.random.split(key, 15)

    def n(k, shape, s=0.1):
        return s * jax.random.normal(k, shape, jnp.float32)

    def u(k, shape):
        return jax.random.uniform(k, shape, jnp.float32, 0.5, 1.5)

    # conv1 (cin->cin, 3x3) + BN1
    w1 = n(ks[0], (3, 3, cin, cin)); b1c = n(ks[1], (cin,))
    g1, be1, m1, v1 = u(ks[2], (cin,)), n(ks[3], (cin,)), n(ks[4], (cin,)), u(ks[5], (cin,))
    w1f, b1f = fold_bn(w1, b1c, g1, be1, m1, v1)

    # conv2 (cin->cout, 3x3) + BN2
    w2 = n(ks[6], (3, 3, cin, cout)); b2c = n(ks[7], (cout,))
    g2, be2, m2, v2 = u(ks[8], (cout,)), n(ks[9], (cout,)), n(ks[10], (cout,)), u(ks[11], (cout,))
    w2f, b2f = fold_bn(w2, b2c, g2, be2, m2, v2)

    # shortcut conv (cin->cout, 1x1) + BNsc
    wsc = n(ks[12], (1, 1, cin, cout)); bscc = n(ks[13], (cout,))
    gsc = u(ks[14], (cout,))
    besc = jnp.zeros((cout,), jnp.float32)
    msc = jnp.zeros((cout,), jnp.float32)
    vsc = jnp.ones((cout,), jnp.float32)
    wscf, bscf = fold_bn(wsc, bscc, gsc, besc, msc, vsc)

    return (w1f, b1f, w2f, b2f, wscf.reshape(cin, cout), bscf)


def reference(x_nchw, w1, b1, w2, b2, wsc, bsc):
    """Pure-JAX reference matching the PyTorch forward (eval-mode BN folded into the
    convs), with the same bf16-weight / bf16-activation, f32-accumulation numerics."""
    bf16, f32 = jnp.bfloat16, jnp.float32
    dn = ('NHWC', 'HWIO', 'NHWC')
    cin, cout = wsc.shape
    x = jnp.transpose(x_nchw, (0, 2, 3, 1)).astype(bf16)
    h = lax.conv_general_dilated(x, w1.astype(bf16), (1, 1), 'SAME',
                                 dimension_numbers=dn, preferred_element_type=f32)
    h = jnp.maximum(h + b1.reshape(1, 1, 1, -1), 0.0)
    h = lax.conv_general_dilated(h.astype(bf16), w2.astype(bf16), (1, 1), 'SAME',
                                 dimension_numbers=dn, preferred_element_type=f32)
    h = h + b2.reshape(1, 1, 1, -1)
    sc = lax.conv_general_dilated(x, wsc.reshape(1, 1, cin, cout).astype(bf16), (1, 1),
                                  'SAME', dimension_numbers=dn,
                                  preferred_element_type=f32)
    sc = sc + bsc.reshape(1, 1, 1, -1)
    out = jnp.maximum(h + sc, 0.0)
    return jnp.transpose(out, (0, 3, 1, 2))


if __name__ == "__main__":
    # TODO(synk): dropout > 0 (training-mode stochastic masking), training-mode
    # BatchNorm batch statistics, and stride != 1 are not modeled; eval/inference
    # semantics with stride=1 + 1x1-conv shortcut only.
    N, Cin, Cout, H, W = 2, 4, 8, 16, 16

    key = jax.random.PRNGKey(0)
    kx, kp = jax.random.split(key)
    x = jax.random.normal(kx, (N, Cin, H, W), jnp.float32)   # NCHW, like PyTorch
    params = make_params(kp, Cin, Cout)

    out = jax.block_until_ready(resnet2d_block(x, *params))
    ref = jax.block_until_ready(reference(x, *params))

    assert out.shape == (N, Cout, H, W), out.shape
    # The kernel's HBM output is bf16 (per the perf review), so allow the bf16
    # rounding bound (~2^-8 relative) on top of f32 accumulation-order differences.
    err = float(jnp.max(jnp.abs(out - ref) / (1.0 + jnp.abs(ref))))
    assert err < 1e-2, f"max normalized err {err}"
    print("KERNEL_OK")
</pallas_src>

<mosaic_0001>
module attributes {stable_mosaic.version = 11 : i64} {
  func.func @resnet2d_block_kernel(%arg0: i32, %arg1: memref<2x16x128xbf16, #tpu.memory_space<vmem>>, %arg2: memref<512x128xbf16, #tpu.memory_space<vmem>>, %arg3: memref<512x128xbf16, #tpu.memory_space<vmem>>, %arg4: memref<1x128xf32, #tpu.memory_space<vmem>>, %arg5: memref<1x128xf32, #tpu.memory_space<vmem>>, %arg6: memref<2x16x128xbf16, #tpu.memory_space<vmem>>, %arg7: memref<2x18x128xf32, #tpu.memory_space<vmem>>, %arg8: memref<32x512xbf16, #tpu.memory_space<vmem>>) attributes {dimension_semantics = [#tpu.dimension_semantics<parallel>], iteration_bounds = array<i64: 1>, scalar_prefetch = 0 : i64, scratch_operands = 2 : i64, tpu.core_type = #tpu.core_type<tc>, window_params = [{transform_indices = @transform_0, window_bounds = array<i64: 2, 16, 128>}, {pipeline_mode = #tpu.pipeline_mode<synchronous>, transform_indices = @transform_1, window_bounds = array<i64: 512, 128>}, {pipeline_mode = #tpu.pipeline_mode<synchronous>, transform_indices = @transform_2, window_bounds = array<i64: 512, 128>}, {pipeline_mode = #tpu.pipeline_mode<synchronous>, transform_indices = @transform_3, window_bounds = array<i64: 1, 128>}, {pipeline_mode = #tpu.pipeline_mode<synchronous>, transform_indices = @transform_4, window_bounds = array<i64: 1, 128>}, {transform_indices = @transform_5, window_bounds = array<i64: 2, 16, 128>}]} {
    %cst = arith.constant 0.000000e+00 : f32
    %0 = vector.broadcast %cst : f32 to vector<2x1x128xf32>
    %c0 = arith.constant 0 : index
    %c0_0 = arith.constant 0 : index
    %c0_1 = arith.constant 0 : index
    %1 = vector.load %arg7[%c0, %c0_0, %c0_1] : memref<2x18x128xf32, #tpu.memory_space<vmem>>, vector<2x1x128xf32>
    tpu.vector_store %arg7[%c0, %c0_0, %c0_1], %0 {strides = array<i32>} : memref<2x18x128xf32, #tpu.memory_space<vmem>>, vector<2x1x128xf32>,
    %cst_2 = arith.constant 0.000000e+00 : f32
    %2 = vector.broadcast %cst_2 : f32 to vector<2x1x128xf32>
    %c0_3 = arith.constant 0 : index
    %c17 = arith.constant 17 : index
    %c0_4 = arith.constant 0 : index
    %3 = vector.load %arg7[%c0_3, %c17, %c0_4] : memref<2x18x128xf32, #tpu.memory_space<vmem>>, vector<2x1x128xf32>
    tpu.vector_store %arg7[%c0_3, %c17, %c0_4], %2 {strides = array<i32>} : memref<2x18x128xf32, #tpu.memory_space<vmem>>, vector<2x1x128xf32>,
    %c0_5 = arith.constant 0 : index
    %c0_6 = arith.constant 0 : index
    %c0_7 = arith.constant 0 : index
    %4 = vector.load %arg1[%c0_5, %c0_6, %c0_7] : memref<2x16x128xbf16, #tpu.memory_space<vmem>>, vector<2x16x128xbf16>
    %5 = arith.extf %4 : vector<2x16x128xbf16> to vector<2x16x128xf32>
    %c0_8 = arith.constant 0 : index
    %c1 = arith.constant 1 : index
    %c0_9 = arith.constant 0 : index
    %6 = vector.load %arg7[%c0_8, %c1, %c0_9] : memref<2x18x128xf32, #tpu.memory_space<vmem>>, vector<2x16x128xf32>
    tpu.vector_store %arg7[%c0_8, %c1, %c0_9], %5 {strides = array<i32>} : memref<2x18x128xf32, #tpu.memory_space<vmem>>, vector<2x16x128xf32>,
    %7 = vector.shape_cast %4 : vector<2x16x128xbf16> to vector<32x128xbf16>
    %c0_10 = arith.constant 0 : index
    %c384 = arith.constant 384 : index
    %8 = vector.load %arg8[%c0_10, %c384] : memref<32x512xbf16, #tpu.memory_space<vmem>>, vector<32x128xbf16>
    tpu.vector_store %arg8[%c0_10, %c384], %7 {strides = array<i32>} : memref<32x512xbf16, #tpu.memory_space<vmem>>, vector<32x128xbf16>,
    %c0_11 = arith.constant 0 : index
    %c0_12 = arith.constant 0 : index
    %c0_13 = arith.constant 0 : index
    %9 = vector.load %arg7[%c0_11, %c0_12, %c0_13] : memref<2x18x128xf32, #tpu.memory_space<vmem>>, vector<1x16x128xf32>
    %10 = vector.shape_cast %9 : vector<1x16x128xf32> to vector<16x128xf32>
    %11 = arith.truncf %10 : vector<16x128xf32> to vector<16x128xbf16>
    %c0_14 = arith.constant 0 : index
    %c0_15 = arith.constant 0 : index
    %12 = vector.load %arg8[%c0_14, %c0_15] : memref<32x512xbf16, #tpu.memory_space<vmem>>, vector<16x128xbf16>
    tpu.vector_store %arg8[%c0_14, %c0_15], %11 {strides = array<i32>} : memref<32x512xbf16, #tpu.memory_space<vmem>>, vector<16x128xbf16>,
    %c0_16 = arith.constant 0 : index
    %c1_17 = arith.constant 1 : index
    %c0_18 = arith.constant 0 : index
    %13 = vector.load %arg7[%c0_16, %c1_17, %c0_18] : memref<2x18x128xf32, #tpu.memory_space<vmem>>, vector<1x16x128xf32>
    %14 = vector.shape_cast %13 : vector<1x16x128xf32> to vector<16x128xf32>
    %15 = arith.truncf %14 : vector<16x128xf32> to vector<16x128xbf16>
    %c0_19 = arith.constant 0 : index
    %c128 = arith.constant 128 : index
    %16 = vector.load %arg8[%c0_19, %c128] : memref<32x512xbf16, #tpu.memory_space<vmem>>, vector<16x128xbf16>
    tpu.vector_store %arg8[%c0_19, %c128], %15 {strides = array<i32>} : memref<32x512xbf16, #tpu.memory_space<vmem>>, vector<16x128xbf16>,
    %c0_20 = arith.constant 0 : index
    %c2 = arith.constant 2 : index
    %c0_21 = arith.constant 0 : index
    %17 = vector.load %arg7[%c0_20, %c2, %c0_21] : memref<2x18x128xf32, #tpu.memory_space<vmem>>, vector<1x16x128xf32>
    %18 = vector.shape_cast %17 : vector<1x16x128xf32> to vector<16x128xf32>
    %19 = arith.truncf %18 : vector<16x128xf32> to vector<16x128xbf16>
    %c0_22 = arith.constant 0 : index
    %c256 = arith.constant 256 : index
    %20 = vector.load %arg8[%c0_22, %c256] : memref<32x512xbf16, #tpu.memory_space<vmem>>, vector<16x128xbf16>
    tpu.vector_store %arg8[%c0_22, %c256], %19 {strides = array<i32>} : memref<32x512xbf16, #tpu.memory_space<vmem>>, vector<16x128xbf16>,
    %c1_23 = arith.constant 1 : index
    %c0_24 = arith.constant 0 : index
    %c0_25 = arith.constant 0 : index
    %21 = vector.load %arg7[%c1_23, %c0_24, %c0_25] : memref<2x18x128xf32, #tpu.memory_space<vmem>>, vector<1x16x128xf32>
    %22 = vector.shape_cast %21 : vector<1x16x128xf32> to vector<16x128xf32>
    %23 = arith.truncf %22 : vector<16x128xf32> to vector<16x128xbf16>
    %c16 = arith.constant 16 : index
    %c0_26 = arith.constant 0 : index
    %24 = vector.load %arg8[%c16, %c0_26] : memref<32x512xbf16, #tpu.memory_space<vmem>>, vector<16x128xbf16>
    tpu.vector_store %arg8[%c16, %c0_26], %23 {strides = array<i32>} : memref<32x512xbf16, #tpu.memory_space<vmem>>, vector<16x128xbf16>,
    %c1_27 = arith.constant 1 : index
    %c1_28 = arith.constant 1 : index
    %c0_29 = arith.constant 0 : index
    %25 = vector.load %arg7[%c1_27, %c1_28, %c0_29] : memref<2x18x128xf32, #tpu.memory_space<vmem>>, vector<1x16x128xf32>
    %26 = vector.shape_cast %25 : vector<1x16x128xf32> to vector<16x128xf32>
    %27 = arith.truncf %26 : vector<16x128xf32> to vector<16x128xbf16>
    %c16_30 = arith.constant 16 : index
    %c128_31 = arith.constant 128 : index
    %28 = vector.load %arg8[%c16_30, %c128_31] : memref<32x512xbf16, #tpu.memory_space<vmem>>, vector<16x128xbf16>
    tpu.vector_store %arg8[%c16_30, %c128_31], %27 {strides = array<i32>} : memref<32x512xbf16, #tpu.memory_space<vmem>>, vector<16x128xbf16>,
    %c1_32 = arith.constant 1 : index
    %c2_33 = arith.constant 2 : index
    %c0_34 = arith.constant 0 : index
    %29 = vector.load %arg7[%c1_32, %c2_33, %c0_34] : memref<2x18x128xf32, #tpu.memory_space<vmem>>, vector<1x16x128xf32>
    %30 = vector.shape_cast %29 : vector<1x16x128xf32> to vector<16x128xf32>
    %31 = arith.truncf %30 : vector<16x128xf32> to vector<16x128xbf16>
    %c16_35 = arith.constant 16 : index
    %c256_36 = arith.constant 256 : index
    %32 = vector.load %arg8[%c16_35, %c256_36] : memref<32x512xbf16, #tpu.memory_space<vmem>>, vector<16x128xbf16>
    tpu.vector_store %arg8[%c16_35, %c256_36], %31 {strides = array<i32>} : memref<32x512xbf16, #tpu.memory_space<vmem>>, vector<16x128xbf16>,
    %c0_37 = arith.constant 0 : index
    %c0_38 = arith.constant 0 : index
    %33 = vector.load %arg8[%c0_37, %c0_38] : memref<32x512xbf16, #tpu.memory_space<vmem>>, vector<32x512xbf16>
    %c0_39 = arith.constant 0 : index
    %c0_40 = arith.constant 0 : index
    %34 = vector.load %arg2[%c0_39, %c0_40] : memref<512x128xbf16, #tpu.memory_space<vmem>>, vector<512x128xbf16>
    %cst_41 = arith.constant dense<0.000000e+00> : vector<32x128xf32>
    %35 = tpu.matmul %33, %34, %cst_41 {dimension_numbers = #tpu.dot_dimension_numbers<[1], [0], [0], [1], [0, 0, 1, 1], [], []>} : vector<32x512xbf16>, vector<512x128xbf16>, vector<32x128xf32> -> vector<32x128xf32>
    %c0_42 = arith.constant 0 : index
    %c0_43 = arith.constant 0 : index
    %36 = vector.load %arg4[%c0_42, %c0_43] : memref<1x128xf32, #tpu.memory_space<vmem>>, vector<1x128xf32>
    %37 = vector.broadcast %36 : vector<1x128xf32> to vector<32x128xf32>
    %38 = arith.addf %35, %37 : vector<32x128xf32>
    %cst_44 = arith.constant 0.000000e+00 : f32
    %39 = vector.broadcast %cst_44 : f32 to vector<32x128xf32>
    %40 = arith.maximumf %38, %39 : vector<32x128xf32>
    %41 = vector.shape_cast %40 : vector<32x128xf32> to vector<2x16x128xf32>
    %c0_45 = arith.constant 0 : index
    %c1_46 = arith.constant 1 : index
    %c0_47 = arith.constant 0 : index
    %42 = vector.load %arg7[%c0_45, %c1_46, %c0_47] : memref<2x18x128xf32, #tpu.memory_space<vmem>>, vector<2x16x128xf32>
    tpu.vector_store %arg7[%c0_45, %c1_46, %c0_47], %41 {strides = array<i32>} : memref<2x18x128xf32, #tpu.memory_space<vmem>>, vector<2x16x128xf32>,
    %c0_48 = arith.constant 0 : index
    %c0_49 = arith.constant 0 : index
    %c0_50 = arith.constant 0 : index
    %43 = vector.load %arg7[%c0_48, %c0_49, %c0_50] : memref<2x18x128xf32, #tpu.memory_space<vmem>>, vector<1x16x128xf32>
    %44 = vector.shape_cast %43 : vector<1x16x128xf32> to vector<16x128xf32>
    %45 = arith.truncf %44 : vector<16x128xf32> to vector<16x128xbf16>
    %c0_51 = arith.constant 0 : index
    %c0_52 = arith.constant 0 : index
    %46 = vector.load %arg8[%c0_51, %c0_52] : memref<32x512xbf16, #tpu.memory_space<vmem>>, vector<16x128xbf16>
    tpu.vector_store %arg8[%c0_51, %c0_52], %45 {strides = array<i32>} : memref<32x512xbf16, #tpu.memory_space<vmem>>, vector<16x128xbf16>,
    %c0_53 = arith.constant 0 : index
    %c1_54 = arith.constant 1 : index
    %c0_55 = arith.constant 0 : index
    %47 = vector.load %arg7[%c0_53, %c1_54, %c0_55] : memref<2x18x128xf32, #tpu.memory_space<vmem>>, vector<1x16x128xf32>
    %48 = vector.shape_cast %47 : vector<1x16x128xf32> to vector<16x128xf32>
    %49 = arith.truncf %48 : vector<16x128xf32> to vector<16x128xbf16>
    %c0_56 = arith.constant 0 : index
    %c128_57 = arith.constant 128 : index
    %50 = vector.load %arg8[%c0_56, %c128_57] : memref<32x512xbf16, #tpu.memory_space<vmem>>, vector<16x128xbf16>
    tpu.vector_store %arg8[%c0_56, %c128_57], %49 {strides = array<i32>} : memref<32x512xbf16, #tpu.memory_space<vmem>>, vector<16x128xbf16>,
    %c0_58 = arith.constant 0 : index
    %c2_59 = arith.constant 2 : index
    %c0_60 = arith.constant 0 : index
    %51 = vector.load %arg7[%c0_58, %c2_59, %c0_60] : memref<2x18x128xf32, #tpu.memory_space<vmem>>, vector<1x16x128xf32>
    %52 = vector.shape_cast %51 : vector<1x16x128xf32> to vector<16x128xf32>
    %53 = arith.truncf %52 : vector<16x128xf32> to vector<16x128xbf16>
    %c0_61 = arith.constant 0 : index
    %c256_62 = arith.constant 256 : index
    %54 = vector.load %arg8[%c0_61, %c256_62] : memref<32x512xbf16, #tpu.memory_space<vmem>>, vector<16x128xbf16>
    tpu.vector_store %arg8[%c0_61, %c256_62], %53 {strides = array<i32>} : memref<32x512xbf16, #tpu.memory_space<vmem>>, vector<16x128xbf16>,
    %c1_63 = arith.constant 1 : index
    %c0_64 = arith.constant 0 : index
    %c0_65 = arith.constant 0 : index
    %55 = vector.load %arg7[%c1_63, %c0_64, %c0_65] : memref<2x18x128xf32, #tpu.memory_space<vmem>>, vector<1x16x128xf32>
    %56 = vector.shape_cast %55 : vector<1x16x128xf32> to vector<16x128xf32>
    %57 = arith.truncf %56 : vector<16x128xf32> to vector<16x128xbf16>
    %c16_66 = arith.constant 16 : index
    %c0_67 = arith.constant 0 : index
    %58 = vector.load %arg8[%c16_66, %c0_67] : memref<32x512xbf16, #tpu.memory_space<vmem>>, vector<16x128xbf16>
    tpu.vector_store %arg8[%c16_66, %c0_67], %57 {strides = array<i32>} : memref<32x512xbf16, #tpu.memory_space<vmem>>, vector<16x128xbf16>,
    %c1_68 = arith.constant 1 : index
    %c1_69 = arith.constant 1 : index
    %c0_70 = arith.constant 0 : index
    %59 = vector.load %arg7[%c1_68, %c1_69, %c0_70] : memref<2x18x128xf32, #tpu.memory_space<vmem>>, vector<1x16x128xf32>
    %60 = vector.shape_cast %59 : vector<1x16x128xf32> to vector<16x128xf32>
    %61 = arith.truncf %60 : vector<16x128xf32> to vector<16x128xbf16>
    %c16_71 = arith.constant 16 : index
    %c128_72 = arith.constant 128 : index
    %62 = vector.load %arg8[%c16_71, %c128_72] : memref<32x512xbf16, #tpu.memory_space<vmem>>, vector<16x128xbf16>
    tpu.vector_store %arg8[%c16_71, %c128_72], %61 {strides = array<i32>} : memref<32x512xbf16, #tpu.memory_space<vmem>>, vector<16x128xbf16>,
    %c1_73 = arith.constant 1 : index
    %c2_74 = arith.constant 2 : index
    %c0_75 = arith.constant 0 : index
    %63 = vector.load %arg7[%c1_73, %c2_74, %c0_75] : memref<2x18x128xf32, #tpu.memory_space<vmem>>, vector<1x16x128xf32>
    %64 = vector.shape_cast %63 : vector<1x16x128xf32> to vector<16x128xf32>
    %65 = arith.truncf %64 : vector<16x128xf32> to vector<16x128xbf16>
    %c16_76 = arith.constant 16 : index
    %c256_77 = arith.constant 256 : index
    %66 = vector.load %arg8[%c16_76, %c256_77] : memref<32x512xbf16, #tpu.memory_space<vmem>>, vector<16x128xbf16>
    tpu.vector_store %arg8[%c16_76, %c256_77], %65 {strides = array<i32>} : memref<32x512xbf16, #tpu.memory_space<vmem>>, vector<16x128xbf16>,
    %c0_78 = arith.constant 0 : index
    %c0_79 = arith.constant 0 : index
    %67 = vector.load %arg8[%c0_78, %c0_79] : memref<32x512xbf16, #tpu.memory_space<vmem>>, vector<32x512xbf16>
    %c0_80 = arith.constant 0 : index
    %c0_81 = arith.constant 0 : index
    %68 = vector.load %arg3[%c0_80, %c0_81] : memref<512x128xbf16, #tpu.memory_space<vmem>>, vector<512x128xbf16>
    %cst_82 = arith.constant dense<0.000000e+00> : vector<32x128xf32>
    %69 = tpu.matmul %67, %68, %cst_82 {dimension_numbers = #tpu.dot_dimension_numbers<[1], [0], [0], [1], [0, 0, 1, 1], [], []>} : vector<32x512xbf16>, vector<512x128xbf16>, vector<32x128xf32> -> vector<32x128xf32>
    %c0_83 = arith.constant 0 : index
    %c0_84 = arith.constant 0 : index
    %70 = vector.load %arg5[%c0_83, %c0_84] : memref<1x128xf32, #tpu.memory_space<vmem>>, vector<1x128xf32>
    %71 = vector.broadcast %70 : vector<1x128xf32> to vector<32x128xf32>
    %72 = arith.addf %69, %71 : vector<32x128xf32>
    %cst_85 = arith.constant 0.000000e+00 : f32
    %73 = vector.broadcast %cst_85 : f32 to vector<32x128xf32>
    %74 = arith.maximumf %72, %73 : vector<32x128xf32>
    %75 = vector.shape_cast %74 : vector<32x128xf32> to vector<2x16x128xf32>
    %76 = arith.truncf %75 : vector<2x16x128xf32> to vector<2x16x128xbf16>
    %c0_86 = arith.constant 0 : index
    %c0_87 = arith.constant 0 : index
    %c0_88 = arith.constant 0 : index
    %77 = vector.load %arg6[%c0_86, %c0_87, %c0_88] : memref<2x16x128xbf16, #tpu.memory_space<vmem>>, vector<2x16x128xbf16>
    tpu.vector_store %arg6[%c0_86, %c0_87, %c0_88], %76 {strides = array<i32>} : memref<2x16x128xbf16, #tpu.memory_space<vmem>>, vector<2x16x128xbf16>,
    return
  }
  func.func @transform_0(%arg0: i32) -> (i32, i32, i32) {
    %c0_i32 = arith.constant 0 : i32
    %c0_i32_0 = arith.constant 0 : i32
    %c0_i32_1 = arith.constant 0 : i32
    return %arg0, %c0_i32, %c0_i32_0 : i32, i32, i32
  }
  func.func @transform_1(%arg0: i32) -> (i32, i32) {
    %c0_i32 = arith.constant 0 : i32
    %c0_i32_0 = arith.constant 0 : i32
    %c0_i32_1 = arith.constant 0 : i32
    return %c0_i32, %c0_i32_0 : i32, i32
  }
  func.func @transform_2(%arg0: i32) -> (i32, i32) {
    %c0_i32 = arith.constant 0 : i32
    %c0_i32_0 = arith.constant 0 : i32
    %c0_i32_1 = arith.constant 0 : i32
    return %c0_i32, %c0_i32_0 : i32, i32
  }
  func.func @transform_3(%arg0: i32) -> (i32, i32) {
    %c0_i32 = arith.constant 0 : i32
    %c0_i32_0 = arith.constant 0 : i32
    %c0_i32_1 = arith.constant 0 : i32
    return %c0_i32, %c0_i32_0 : i32, i32
  }
  func.func @transform_4(%arg0: i32) -> (i32, i32) {
    %c0_i32 = arith.constant 0 : i32
    %c0_i32_0 = arith.constant 0 : i32
    %c0_i32_1 = arith.constant 0 : i32
    return %c0_i32, %c0_i32_0 : i32, i32
  }
  func.func @transform_5(%arg0: i32) -> (i32, i32, i32) {
    %c0_i32 = arith.constant 0 : i32
    %c0_i32_0 = arith.constant 0 : i32
    %c0_i32_1 = arith.constant 0 : i32
    return %arg0, %c0_i32, %c0_i32_0 : i32, i32, i32
  }
}

</mosaic_0001>

<llo_original>
// kernel: tpu_custom_call.1
$region0: #{tpu_custom_call.1}
  #allocation0 [shape = 'u32[]', space=smem, size = 0x4, offset = 0x4, fixed_abs, tag = 'smem constant byte address 0x4 - core index']
  #allocation1 [shape = 'u32[144,128]{1,0:T(1,128)}', space=vmem, size = 0x12000, scoped, tag = 'internal scratch']
  #allocation2 [shape = 'f32[2,18,128]{2,1,0:T(8,128)}', space=vmem, size = 0x6000, scoped, tag = 'scratch operand']
  #allocation3 [shape = 'bf16[32,512]{1,0:T(8,128)(2,1)}', space=vmem, size = 0x8000, scoped, tag = 'scratch operand']
  %s0 = inlined_call_operand.hbm [shape: bf16[2,16,128], index: 0, kind: input, shape index: {}]
  %s1 = inlined_call_operand.hbm [shape: bf16[512,128], index: 1, kind: input, shape index: {}]
  %s2 = inlined_call_operand.hbm [shape: bf16[512,128], index: 2, kind: input, shape index: {}]
  %s3 = inlined_call_operand.vmem [shape: f32[1,128], index: 3, kind: input, shape index: {}]
  %s4 = inlined_call_operand.vmem [shape: f32[1,128], index: 4, kind: input, shape index: {}]
  %s5 = inlined_call_operand.hbm [shape: bf16[2,16,128], index: 5, kind: output, shape index: {}]
  %s6 = sld [smem:[#allocation0]]
  $region42: #{tpu_custom_call.1} parent=0
    _
  %s8 = ssub.s32 1, %s6
  %s9 = scalar_select 0, %s8, %s6
  $region1: #{tpu_custom_call.1} parent=0
    #allocation4 [shape = 'u8[8192]{0}', space=vmem, size = 0x2000, scoped, tag = 'input window, operand 0, single buffered']
    #allocation5 [shape = 's32[1]{0}', space=sflag, size = 0x4, scoped, tag = 'scoped memory for tpu_custom_call.1']
    #allocation6 [shape = 's32[1]{0}', space=sflag, size = 0x4, scoped, tag = 'scoped memory for tpu_custom_call.1']
    #allocation7 [shape = 'u8[131072]{0}', space=vmem, size = 0x20000, scoped, tag = 'input window, operand 1, single buffered']
    #allocation8 [shape = 's32[1]{0}', space=sflag, size = 0x4, scoped, tag = 'scoped memory for tpu_custom_call.1']
    #allocation9 [shape = 'u8[131072]{0}', space=vmem, size = 0x20000, scoped, tag = 'input window, operand 2, single buffered']
    #allocation10 [shape = 'u8[8192]{0}', space=vmem, size = 0x2000, scoped, tag = 'output window, operand 0, single buffered']
    %10 = vsyncpa [#allocation5], 0
    %11 = vsyncpa [#allocation8], 0
    %12 = vsyncpa [#allocation6], 0
    // Predicated region
    $region2: #{tpu_custom_call.1} parent=1 // pred_check
      _
    $region3: #{tpu_custom_call.1} parent=1 // pred_check_branch
      %14 = sbr.rel (0) target = $region5
    $region4: #{tpu_custom_call.1} parent=1 // pred_region
      %s16 = ssub.s32 256, 256
      %17 = vsyncadd [#allocation5], %s16
      %s18 = sshll.u32 [#allocation4], 4
      %s19 = int_to_ptr.vmem [resolvable:$true] %s18
      %24 = dma.hbm_to_vmem [thread:$0]  %s0, 256, %s19, [#allocation5], 64, 64, 4
    $region5: #{tpu_custom_call.1} parent=1 // pred_fallthru
      _
    // Predicated region
    $region6: #{tpu_custom_call.1} parent=1 // pred_check
      _
    $region7: #{tpu_custom_call.1} parent=1 // pred_check_branch
      %26 = sbr.rel (0) target = $region9
    $region8: #{tpu_custom_call.1} parent=1 // pred_region
      %s28 = ssub.s32 4096, 4096
      %29 = vsyncadd [#allocation8], %s28
      %s30 = sshll.u32 [#allocation7], 4
      %s31 = int_to_ptr.vmem [resolvable:$true] %s30
      %36 = dma.hbm_to_vmem [thread:$0]  %s1, 4096, %s31, [#allocation8], 64, 64, 4
    $region9: #{tpu_custom_call.1} parent=1 // pred_fallthru
      _
    // Predicated region
    $region10: #{tpu_custom_call.1} parent=1 // pred_check
      _
    $region11: #{tpu_custom_call.1} parent=1 // pred_check_branch
      %38 = sbr.rel (0) target = $region13
    $region12: #{tpu_custom_call.1} parent=1 // pred_region
      %s40 = ssub.s32 4096, 4096
      %41 = vsyncadd [#allocation8], %s40
      %s42 = sshll.u32 [#allocation9], 4
      %s43 = int_to_ptr.vmem [resolvable:$true] %s42
      %48 = dma.hbm_to_vmem [thread:$0]  %s2, 4096, %s43, [#allocation8], 64, 64, 4
    $region13: #{tpu_custom_call.1} parent=1 // pred_fallthru
      _
    // Predicated region
    $region14: #{tpu_custom_call.1} parent=1 // pred_check
      _
    $region15: #{tpu_custom_call.1} parent=1 // pred_check_branch
      %50 = sbr.rel (0) target = $region17
    $region16: #{tpu_custom_call.1} parent=1 // pred_region
      _
    $region17: #{tpu_custom_call.1} parent=1 // pred_fallthru
      _
    // Predicated region
    $region18: #{tpu_custom_call.1} parent=1 // pred_check
      _
    $region19: #{tpu_custom_call.1} parent=1 // pred_check_branch
      %52 = sbr.rel (0) target = $region21
    $region20: #{tpu_custom_call.1} parent=1 // pred_region
      _
    $region21: #{tpu_custom_call.1} parent=1 // pred_fallthru
      _
    // Predicated region
    $region22: #{tpu_custom_call.1} parent=1 // pred_check
      _
    $region23: #{tpu_custom_call.1} parent=1 // pred_check_branch
      %54 = sbr.rel (0) target = $region25
    $region24: #{tpu_custom_call.1} parent=1 // pred_region
      %55 = dma.done [#allocation5], 256
    $region25: #{tpu_custom_call.1} parent=1 // pred_fallthru
      _
    // Predicated region
    $region26: #{tpu_custom_call.1} parent=1 // pred_check
      _
    $region27: #{tpu_custom_call.1} parent=1 // pred_check_branch
      %57 = sbr.rel (0) target = $region29
    $region28: #{tpu_custom_call.1} parent=1 // pred_region
      %58 = dma.done [#allocation8], 4096
    $region29: #{tpu_custom_call.1} parent=1 // pred_fallthru
      _
    // Predicated region
    $region30: #{tpu_custom_call.1} parent=1 // pred_check
      _
    $region31: #{tpu_custom_call.1} parent=1 // pred_check_branch
      %60 = sbr.rel (0) target = $region33
    $region32: #{tpu_custom_call.1} parent=1 // pred_region
      %61 = dma.done [#allocation8], 4096
    $region33: #{tpu_custom_call.1} parent=1 // pred_fallthru
      _
    %63 = vst [vmem:[#allocation2] sm:$0x1] 0.0
    %64 = vst [vmem:[#allocation2 + $0x18] sm:$0x1] 0.0
    %65 = vst [vmem:[#allocation2 + $0x11] sm:$0x1] 0.0
    %66 = vst [vmem:[#allocation2 + $0x29] sm:$0x1] 0.0
    %v67 = vld [vmem:[#allocation4] sm:$0xf]
    %v68 = vld [vmem:[#allocation4 + $0x4] sm:$0xf]
    %v69 = vld [vmem:[#allocation4 + $0x8] sm:$0xf]
    %v70 = vld [vmem:[#allocation4 + $0xc] sm:$0xf]
    %v71 = vunpack.c.l.bf16 %v67
    %v72 = vunpack.c.l.bf16 %v68
    %v73 = vunpack.c.l.bf16 %v69
    %v74 = vunpack.c.l.bf16 %v70
    %75 = vst [vmem:[#allocation2 + $0x1] sm:$0xff] %v71
    %76 = vst [vmem:[#allocation2 + $0x9] sm:$0xff] %v72
    %77 = vst [vmem:[#allocation2 + $0x19] sm:$0xff] %v73
    %78 = vst [vmem:[#allocation2 + $0x21] sm:$0xff] %v74
    %79 = vst [vmem:[#allocation3 + $0xc] sm:$0xf] %v67
    %80 = vst [vmem:[#allocation3 + $0x1c] sm:$0xf] %v68
    %81 = vst [vmem:[#allocation3 + $0x2c] sm:$0xf] %v69
    %82 = vst [vmem:[#allocation3 + $0x3c] sm:$0xf] %v70
    %v83 = vld [vmem:[#allocation2] sm:$0xff]
    %v84 = vld [vmem:[#allocation2 + $0x8] sm:$0xff]
    %v85 = vpack.c.bf16 %v84, %v83
    %v87 = vunpack.c.l.b16 %v85
    %v88 = vunpack.c.h.b16 %v85
    %v89 = vpack.c.b16 %v87, %v87
    %v90 = vpack.c.b16 %v88, %v88
    %93 = vst [vmem:[#allocation3] sm:$0xf] %v89
    %94 = vst [vmem:[#allocation3 + $0x10] sm:$0xf] %v90
    %v95 = vld [vmem:[#allocation2 + $0x1] sm:$0xff]
    %v96 = vld [vmem:[#allocation2 + $0x9] sm:$0xff]
    %v97 = vpack.c.bf16 %v96, %v95
    %v99 = vunpack.c.l.b16 %v97
    %v100 = vunpack.c.h.b16 %v97
    %v101 = vpack.c.b16 %v99, %v99
    %v102 = vpack.c.b16 %v100, %v100
    %105 = vst [vmem:[#allocation3 + $0x4] sm:$0xf] %v101
    %106 = vst [vmem:[#allocation3 + $0x14] sm:$0xf] %v102
    %v107 = vld [vmem:[#allocation2 + $0x2] sm:$0xff]
    %v108 = vld [vmem:[#allocation2 + $0xa] sm:$0xff]
    %v109 = vpack.c.bf16 %v108, %v107
    %v111 = vunpack.c.l.b16 %v109
    %v112 = vunpack.c.h.b16 %v109
    %v113 = vpack.c.b16 %v111, %v111
    %v114 = vpack.c.b16 %v112, %v112
    %117 = vst [vmem:[#allocation3 + $0x8] sm:$0xf] %v113
    %118 = vst [vmem:[#allocation3 + $0x18] sm:$0xf] %v114
    %s119 = scalar_lea.vmem [#allocation2], 24
    %v120 = vld [vmem:[%s119] sm:$0xff]
    %v121 = vld [vmem:[%s119 + $0x8] sm:$0xff]
    %v122 = vpack.c.bf16 %v121, %v120
    %v124 = vunpack.c.l.b16 %v122
    %v125 = vunpack.c.h.b16 %v122
    %v126 = vpack.c.b16 %v124, %v124
    %v127 = vpack.c.b16 %v125, %v125
    %130 = vst [vmem:[#allocation3 + $0x20] sm:$0xf] %v126
    %131 = vst [vmem:[#allocation3 + $0x30] sm:$0xf] %v127
    %v132 = vld [vmem:[%s119 + $0x1] sm:$0xff]
    %v133 = vld [vmem:[%s119 + $0x9] sm:$0xff]
    %v134 = vpack.c.bf16 %v133, %v132
    %v136 = vunpack.c.l.b16 %v134
    %v137 = vunpack.c.h.b16 %v134
    %v138 = vpack.c.b16 %v136, %v136
    %v139 = vpack.c.b16 %v137, %v137
    %142 = vst [vmem:[#allocation3 + $0x24] sm:$0xf] %v138
    %143 = vst [vmem:[#allocation3 + $0x34] sm:$0xf] %v139
    %v144 = vld [vmem:[%s119 + $0x2] sm:$0xff]
    %v145 = vld [vmem:[%s119 + $0xa] sm:$0xff]
    %v146 = vpack.c.bf16 %v145, %v144
    %v148 = vunpack.c.l.b16 %v146
    %v149 = vunpack.c.h.b16 %v146
    %v150 = vpack.c.b16 %v148, %v148
    %v151 = vpack.c.b16 %v149, %v149
    %154 = vst [vmem:[#allocation3 + $0x28] sm:$0xf] %v150
    %155 = vst [vmem:[#allocation3 + $0x38] sm:$0xf] %v151
    %v156 = vld [vmem:[#allocation3] sm:$0xff]
    %v157 = vld [vmem:[#allocation3 + $0x8] sm:$0xff]
    %v158 = vld [vmem:[#allocation3 + $0x10] sm:$0xff]
    %v159 = vld [vmem:[#allocation3 + $0x18] sm:$0xff]
    %v160 = vld [vmem:[#allocation3 + $0x20] sm:$0xff]
    %v161 = vld [vmem:[#allocation3 + $0x28] sm:$0xff]
    %v162 = vld [vmem:[#allocation3 + $0x30] sm:$0xff]
    %v163 = vld [vmem:[#allocation3 + $0x38] sm:$0xff]
    %v164 = vld [vmem:[#allocation7] sm:$0xf]
    %v165 = vld [vmem:[#allocation7 + $0x4] sm:$0xf]
    %v166 = vld [vmem:[#allocation7 + $0x8] sm:$0xf]
    %v167 = vld [vmem:[#allocation7 + $0xc] sm:$0xf]
    %v168 = vld [vmem:[#allocation7 + $0x10] sm:$0xf]
    %v169 = vld [vmem:[#allocation7 + $0x14] sm:$0xf]
    %v170 = vld [vmem:[#allocation7 + $0x18] sm:$0xf]
    %v171 = vld [vmem:[#allocation7 + $0x1c] sm:$0xf]
    %v172 = vld [vmem:[#allocation7 + $0x20] sm:$0xf]
    %v173 = vld [vmem:[#allocation7 + $0x24] sm:$0xf]
    %v174 = vld [vmem:[#allocation7 + $0x28] sm:$0xf]
    %v175 = vld [vmem:[#allocation7 + $0x2c] sm:$0xf]
    %v176 = vld [vmem:[#allocation7 + $0x30] sm:$0xf]
    %v177 = vld [vmem:[#allocation7 + $0x34] sm:$0xf]
    %v178 = vld [vmem:[#allocation7 + $0x38] sm:$0xf]
    %v179 = vld [vmem:[#allocation7 + $0x3c] sm:$0xf]
    %v180 = vld [vmem:[#allocation7 + $0x40] sm:$0xf]
    %v181 = vld [vmem:[#allocation7 + $0x44] sm:$0xf]
    %v182 = vld [vmem:[#allocation7 + $0x48] sm:$0xf]
    %v183 = vld [vmem:[#allocation7 + $0x4c] sm:$0xf]
    %v184 = vld [vmem:[#allocation7 + $0x50] sm:$0xf]
    %v185 = vld [vmem:[#allocation7 + $0x54] sm:$0xf]
    %v186 = vld [vmem:[#allocation7 + $0x58] sm:$0xf]
    %v187 = vld [vmem:[#allocation7 + $0x5c] sm:$0xf]
    %v188 = vld [vmem:[#allocation7 + $0x60] sm:$0xf]
    %v189 = vld [vmem:[#allocation7 + $0x64] sm:$0xf]
    %v190 = vld [vmem:[#allocation7 + $0x68] sm:$0xf]
    %v191 = vld [vmem:[#allocation7 + $0x6c] sm:$0xf]
    %v192 = vld [vmem:[#allocation7 + $0x70] sm:$0xf]
    %v193 = vld [vmem:[#allocation7 + $0x74] sm:$0xf]
    %v194 = vld [vmem:[#allocation7 + $0x78] sm:$0xf]
    %v195 = vld [vmem:[#allocation7 + $0x7c] sm:$0xf]
    %v196 = vld [vmem:[#allocation7 + $0x80] sm:$0xf]
    %v197 = vld [vmem:[#allocation7 + $0x84] sm:$0xf]
    %v198 = vld [vmem:[#allocation7 + $0x88] sm:$0xf]
    %v199 = vld [vmem:[#allocation7 + $0x8c] sm:$0xf]
    %v200 = vld [vmem:[#allocation7 + $0x90] sm:$0xf]
    %v201 = vld [vmem:[#allocation7 + $0x94] sm:$0xf]
    %v202 = vld [vmem:[#allocation7 + $0x98] sm:$0xf]
    %v203 = vld [vmem:[#allocation7 + $0x9c] sm:$0xf]
    %v204 = vld [vmem:[#allocation7 + $0xa0] sm:$0xf]
    %v205 = vld [vmem:[#allocation7 + $0xa4] sm:$0xf]
    %v206 = vld [vmem:[#allocation7 + $0xa8] sm:$0xf]
    %v207 = vld [vmem:[#allocation7 + $0xac] sm:$0xf]
    %v208 = vld [vmem:[#allocation7 + $0xb0] sm:$0xf]
    %v209 = vld [vmem:[#allocation7 + $0xb4] sm:$0xf]
    %v210 = vld [vmem:[#allocation7 + $0xb8] sm:$0xf]
    %v211 = vld [vmem:[#allocation7 + $0xbc] sm:$0xf]
    %v212 = vld [vmem:[#allocation7 + $0xc0] sm:$0xf]
    %v213 = vld [vmem:[#allocation7 + $0xc4] sm:$0xf]
    %v214 = vld [vmem:[#allocation7 + $0xc8] sm:$0xf]
    %v215 = vld [vmem:[#allocation7 + $0xcc] sm:$0xf]
    %v216 = vld [vmem:[#allocation7 + $0xd0] sm:$0xf]
    %v217 = vld [vmem:[#allocation7 + $0xd4] sm:$0xf]
    %v218 = vld [vmem:[#allocation7 + $0xd8] sm:$0xf]
    %v219 = vld [vmem:[#allocation7 + $0xdc] sm:$0xf]
    %v220 = vld [vmem:[#allocation7 + $0xe0] sm:$0xf]
    %v221 = vld [vmem:[#allocation7 + $0xe4] sm:$0xf]
    %v222 = vld [vmem:[#allocation7 + $0xe8] sm:$0xf]
    %v223 = vld [vmem:[#allocation7 + $0xec] sm:$0xf]
    %v224 = vld [vmem:[#allocation7 + $0xf0] sm:$0xf]
    %v225 = vld [vmem:[#allocation7 + $0xf4] sm:$0xf]
    %v226 = vld [vmem:[#allocation7 + $0xf8] sm:$0xf]
    %v227 = vld [vmem:[#allocation7 + $0xfc] sm:$0xf]
    %v228 = vld [vmem:[%s3] sm:$0x1]
    %v230 = vlaneseq
    %v231 = vshrl.u32 %v230, 7
    %v232 = vsub.s32 0, %v231
    %v233 = vrot.slane %v228, %v232
    %v243 = vunpack.c.l.b16 %v156
    %v244 = vunpack.c.h.b16 %v156
    %v245 = vunpack.c.l.b16 %v157
    %v246 = vunpack.c.h.b16 %v157
    %v247 = vunpack.c.l.b16 %v158
    %v248 = vunpack.c.h.b16 %v158
    %v249 = vunpack.c.l.b16 %v159
    %v250 = vunpack.c.h.b16 %v159
    %v251 = vunpack.c.l.b16 %v160
    %v252 = vunpack.c.h.b16 %v160
    %v253 = vunpack.c.l.b16 %v161
    %v254 = vunpack.c.h.b16 %v161
    %v255 = vunpack.c.l.b16 %v162
    %v256 = vunpack.c.h.b16 %v162
    %v257 = vunpack.c.l.b16 %v163
    %v258 = vunpack.c.h.b16 %v163
    %v259 = vpack.c.b16 %v247, %v243
    %v260 = vpack.c.b16 %v248, %v244
    %v261 = vpack.c.b16 %v249, %v245
    %v262 = vpack.c.b16 %v250, %v246
    %v263 = vpack.c.b16 %v255, %v251
    %v264 = vpack.c.b16 %v256, %v252
    %v265 = vpack.c.b16 %v257, %v253
    %v266 = vpack.c.b16 %v258, %v254
    %v339 = vunpack.c.l.b16 %v164
    %v340 = vunpack.c.l.b16 %v165
    %v341 = vunpack.c.l.b16 %v166
    %v342 = vunpack.c.l.b16 %v167
    %v343 = vunpack.c.l.b16 %v168
    %v344 = vunpack.c.l.b16 %v169
    %v345 = vunpack.c.l.b16 %v170
    %v346 = vunpack.c.l.b16 %v171
    %v347 = vunpack.c.l.b16 %v172
    %v348 = vunpack.c.l.b16 %v173
    %v349 = vunpack.c.l.b16 %v174
    %v350 = vunpack.c.l.b16 %v175
    %v351 = vunpack.c.l.b16 %v176
    %v352 = vunpack.c.l.b16 %v177
    %v353 = vunpack.c.l.b16 %v178
    %v354 = vunpack.c.l.b16 %v179
    %v355 = vunpack.c.l.b16 %v180
    %v356 = vunpack.c.l.b16 %v181
    %v357 = vunpack.c.l.b16 %v182
    %v358 = vunpack.c.l.b16 %v183
    %v359 = vunpack.c.l.b16 %v184
    %v360 = vunpack.c.l.b16 %v185
    %v361 = vunpack.c.l.b16 %v186
    %v362 = vunpack.c.l.b16 %v187
    %v363 = vunpack.c.l.b16 %v188
    %v364 = vunpack.c.l.b16 %v189
    %v365 = vunpack.c.l.b16 %v190
    %v366 = vunpack.c.l.b16 %v191
    %v367 = vunpack.c.l.b16 %v192
    %v368 = vunpack.c.l.b16 %v193
    %v369 = vunpack.c.l.b16 %v194
    %v370 = vunpack.c.l.b16 %v195
    %v371 = vunpack.c.l.b16 %v196
    %v372 = vunpack.c.l.b16 %v197
    %v373 = vunpack.c.l.b16 %v198
    %v374 = vunpack.c.l.b16 %v199
    %v375 = vunpack.c.l.b16 %v200
    %v376 = vunpack.c.l.b16 %v201
    %v377 = vunpack.c.l.b16 %v202
    %v378 = vunpack.c.l.b16 %v203
    %v379 = vunpack.c.l.b16 %v204
    %v380 = vunpack.c.l.b16 %v205
    %v381 = vunpack.c.l.b16 %v206
    %v382 = vunpack.c.l.b16 %v207
    %v383 = vunpack.c.l.b16 %v208
    %v384 = vunpack.c.l.b16 %v209
    %v385 = vunpack.c.l.b16 %v210
    %v386 = vunpack.c.l.b16 %v211
    %v387 = vunpack.c.l.b16 %v212
    %v388 = vunpack.c.l.b16 %v213
    %v389 = vunpack.c.l.b16 %v214
    %v390 = vunpack.c.l.b16 %v215
    %v391 = vunpack.c.l.b16 %v216
    %v392 = vunpack.c.l.b16 %v217
    %v393 = vunpack.c.l.b16 %v218
    %v394 = vunpack.c.l.b16 %v219
    %v395 = vunpack.c.l.b16 %v220
    %v396 = vunpack.c.l.b16 %v221
    %v397 = vunpack.c.l.b16 %v222
    %v398 = vunpack.c.l.b16 %v223
    %v399 = vunpack.c.l.b16 %v224
    %v400 = vunpack.c.l.b16 %v225
    %v401 = vunpack.c.l.b16 %v226
    %v402 = vunpack.c.l.b16 %v227
    %v403 = vpack.c.b16 %v340, %v339
    %v404 = vpack.c.b16 %v342, %v341
    %v405 = vpack.c.b16 %v344, %v343
    %v406 = vpack.c.b16 %v346, %v345
    %v407 = vpack.c.b16 %v348, %v347
    %v408 = vpack.c.b16 %v350, %v349
    %v409 = vpack.c.b16 %v352, %v351
    %v410 = vpack.c.b16 %v354, %v353
    %v411 = vpack.c.b16 %v356, %v355
    %v412 = vpack.c.b16 %v358, %v357
    %v413 = vpack.c.b16 %v360, %v359
    %v414 = vpack.c.b16 %v362, %v361
    %v415 = vpack.c.b16 %v364, %v363
    %v416 = vpack.c.b16 %v366, %v365
    %v417 = vpack.c.b16 %v368, %v367
    %v418 = vpack.c.b16 %v370, %v369
    %v419 = vpack.c.b16 %v372, %v371
    %v420 = vpack.c.b16 %v374, %v373
    %v421 = vpack.c.b16 %v376, %v375
    %v422 = vpack.c.b16 %v378, %v377
    %v423 = vpack.c.b16 %v380, %v379
    %v424 = vpack.c.b16 %v382, %v381
    %v425 = vpack.c.b16 %v384, %v383
    %v426 = vpack.c.b16 %v386, %v385
    %v427 = vpack.c.b16 %v388, %v387
    %v428 = vpack.c.b16 %v390, %v389
    %v429 = vpack.c.b16 %v392, %v391
    %v430 = vpack.c.b16 %v394, %v393
    %v431 = vpack.c.b16 %v396, %v395
    %v432 = vpack.c.b16 %v398, %v397
    %v433 = vpack.c.b16 %v400, %v399
    %v434 = vpack.c.b16 %v402, %v401
    %467 = vmatprep.subr.bf16.mxu0 0
    %468 = vmatpush1.bf16.msra.mxu0 %v410
    %469 = vmatprep.subr.bf16.mxu0 0
    %470 = vmatpush1.bf16.msra.mxu0 %v409
    %471 = vmatprep.subr.bf16.mxu0 0
    %472 = vmatpush1.bf16.msra.mxu0 %v408
    %473 = vmatprep.subr.bf16.mxu0 0
    %474 = vmatpush1.bf16.msra.mxu0 %v407
    %475 = vmatprep.subr.bf16.mxu0 0
    %476 = vmatpush1.bf16.msra.mxu0 %v406
    %477 = vmatprep.subr.bf16.mxu0 0
    %478 = vmatpush1.bf16.msra.mxu0 %v405
    %479 = vmatprep.subr.bf16.mxu0 0
    %480 = vmatpush1.bf16.msra.mxu0 %v404
    %481 = vmatprep.subr.bf16.mxu0 0
    %482 = vmatpush1.bf16.msra.mxu0 %v403
    %483 = vmatprep.subr.bf16.mxu0 0
    %484 = vmatpush2.bf16.msra.mxu0 %v418
    %485 = vmatprep.subr.bf16.mxu0 0
    %486 = vmatpush2.bf16.msra.mxu0 %v417
    %487 = vmatprep.subr.bf16.mxu0 0
    %488 = vmatpush2.bf16.msra.mxu0 %v416
    %489 = vmatprep.subr.bf16.mxu0 0
    %490 = vmatpush2.bf16.msra.mxu0 %v415
    %491 = vmatprep.subr.bf16.mxu0 0
    %492 = vmatpush2.bf16.msra.mxu0 %v414
    %493 = vmatprep.subr.bf16.mxu0 0
    %494 = vmatpush2.bf16.msra.mxu0 %v413
    %495 = vmatprep.subr.bf16.mxu0 0
    %496 = vmatpush2.bf16.msra.mxu0 %v412
    %497 = vmatprep.subr.bf16.mxu0 0
    %498 = vmatpush2.bf16.msra.mxu0 %v411
    %499 = vmatprep.mubr.bf16.mxu0 %v260
    %500 = vmatmul.mubr.bf16.gmra.mxu0 %v259
    %v501 = vpop.f32.mrf.mxu0
    %v502 = vadd.f32 %v233, %v501
    %v503 = vpop.f32.mrf.mxu0
    %v504 = vpop.f32.mrf.mxu0
    %v505 = vadd.f32 %v233, %v504
    %v506 = vpop.f32.mrf.mxu0
    %507 = vmatprep.mubr.bf16.mxu0 %v264
    %508 = vmatmul.mubr.bf16.gmra.mxu0 %v263
    %v509 = vpop.f32.mrf.mxu0
    %v510 = vadd.f32 %v233, %v509
    %v511 = vpop.f32.mrf.mxu0
    %v512 = vpop.f32.mrf.mxu0
    %v513 = vadd.f32 %v233, %v512
    %v514 = vpop.f32.mrf.mxu0
    %515 = vdwg.mxu0
    %516 = vmatprep.subr.bf16.mxu0 0
    %517 = vmatpush1.bf16.msra.mxu0 %v426
    %518 = vmatprep.subr.bf16.mxu0 0
    %519 = vmatpush1.bf16.msra.mxu0 %v425
    %520 = vmatprep.subr.bf16.mxu0 0
    %521 = vmatpush1.bf16.msra.mxu0 %v424
    %522 = vmatprep.subr.bf16.mxu0 0
    %523 = vmatpush1.bf16.msra.mxu0 %v423
    %524 = vmatprep.subr.bf16.mxu0 0
    %525 = vmatpush1.bf16.msra.mxu0 %v422
    %526 = vmatprep.subr.bf16.mxu0 0
    %527 = vmatpush1.bf16.msra.mxu0 %v421
    %528 = vmatprep.subr.bf16.mxu0 0
    %529 = vmatpush1.bf16.msra.mxu0 %v420
    %530 = vmatprep.subr.bf16.mxu0 0
    %531 = vmatpush1.bf16.msra.mxu0 %v419
    %532 = vmatprep.subr.bf16.mxu0 0
    %533 = vmatpush2.bf16.msra.mxu0 %v434
    %534 = vmatprep.subr.bf16.mxu0 0
    %535 = vmatpush2.bf16.msra.mxu0 %v433
    %536 = vmatprep.subr.bf16.mxu0 0
    %537 = vmatpush2.bf16.msra.mxu0 %v432
    %538 = vmatprep.subr.bf16.mxu0 0
    %539 = vmatpush2.bf16.msra.mxu0 %v431
    %540 = vmatprep.subr.bf16.mxu0 0
    %541 = vmatpush2.bf16.msra.mxu0 %v430
    %542 = vmatprep.subr.bf16.mxu0 0
    %543 = vmatpush2.bf16.msra.mxu0 %v429
    %544 = vmatprep.subr.bf16.mxu0 0
    %545 = vmatpush2.bf16.msra.mxu0 %v428
    %546 = vmatprep.subr.bf16.mxu0 0
    %547 = vmatpush2.bf16.msra.mxu0 %v427
    %548 = vmatprep.mubr.bf16.mxu0 %v262
    %549 = vmatmul.mubr.bf16.gmra.mxu0 %v261
    %v550 = vpop.f32.mrf.mxu0
    %v551 = vadd.f32 %v502, %v550
    %v552 = vpop.f32.mrf.mxu0
    %v553 = vpop.f32.mrf.mxu0
    %v554 = vadd.f32 %v505, %v553
    %v555 = vpop.f32.mrf.mxu0
    %556 = vmatprep.mubr.bf16.mxu0 %v266
    %557 = vmatmul.mubr.bf16.gmra.mxu0 %v265
    %v558 = vpop.f32.mrf.mxu0
    %v559 = vadd.f32 %v510, %v558
    %v560 = vpop.f32.mrf.mxu0
    %v561 = vpop.f32.mrf.mxu0
    %v562 = vadd.f32 %v513, %v561
    %v563 = vpop.f32.mrf.mxu0
    %564 = vdwg.mxu0
    %v565 = vmax.f32 %v551, 0.0
    %v566 = vmax.f32 %v554, 0.0
    %v567 = vmax.f32 %v559, 0.0
    %v568 = vmax.f32 %v562, 0.0
    %569 = vst [vmem:[#allocation2 + $0x1] sm:$0xff] %v565
    %570 = vst [vmem:[#allocation2 + $0x9] sm:$0xff] %v566
    %571 = vst [vmem:[#allocation2 + $0x19] sm:$0xff] %v567
    %572 = vst [vmem:[#allocation2 + $0x21] sm:$0xff] %v568
    %v573 = vld [vmem:[#allocation2] sm:$0xff]
    %v574 = vld [vmem:[#allocation2 + $0x8] sm:$0xff]
    %v575 = vpack.c.bf16 %v574, %v573
    %v577 = vunpack.c.l.b16 %v575
    %v578 = vunpack.c.h.b16 %v575
    %v579 = vpack.c.b16 %v577, %v577
    %v580 = vpack.c.b16 %v578, %v578
    %583 = vst [vmem:[#allocation3] sm:$0xf] %v579
    %584 = vst [vmem:[#allocation3 + $0x10] sm:$0xf] %v580
    %v585 = vld [vmem:[#allocation2 + $0x1] sm:$0xff]
    %v586 = vld [vmem:[#allocation2 + $0x9] sm:$0xff]
    %v587 = vpack.c.bf16 %v586, %v585
    %v589 = vunpack.c.l.b16 %v587
    %v590 = vunpack.c.h.b16 %v587
    %v591 = vpack.c.b16 %v589, %v589
    %v592 = vpack.c.b16 %v590, %v590
    %595 = vst [vmem:[#allocation3 + $0x4] sm:$0xf] %v591
    %596 = vst [vmem:[#allocation3 + $0x14] sm:$0xf] %v592
    %v597 = vld [vmem:[#allocation2 + $0x2] sm:$0xff]
    %v598 = vld [vmem:[#allocation2 + $0xa] sm:$0xff]
    %v599 = vpack.c.bf16 %v598, %v597
    %v601 = vunpack.c.l.b16 %v599
    %v602 = vunpack.c.h.b16 %v599
    %v603 = vpack.c.b16 %v601, %v601
    %v604 = vpack.c.b16 %v602, %v602
    %607 = vst [vmem:[#allocation3 + $0x8] sm:$0xf] %v603
    %608 = vst [vmem:[#allocation3 + $0x18] sm:$0xf] %v604
    %v609 = vld [vmem:[%s119] sm:$0xff]
    %v610 = vld [vmem:[%s119 + $0x8] sm:$0xff]
    %v611 = vpack.c.bf16 %v610, %v609
    %v613 = vunpack.c.l.b16 %v611
    %v614 = vunpack.c.h.b16 %v611
    %v615 = vpack.c.b16 %v613, %v613
    %v616 = vpack.c.b16 %v614, %v614
    %619 = vst [vmem:[#allocation3 + $0x20] sm:$0xf] %v615
    %620 = vst [vmem:[#allocation3 + $0x30] sm:$0xf] %v616
    %v621 = vld [vmem:[%s119 + $0x1] sm:$0xff]
    %v622 = vld [vmem:[%s119 + $0x9] sm:$0xff]
    %v623 = vpack.c.bf16 %v622, %v621
    %v625 = vunpack.c.l.b16 %v623
    %v626 = vunpack.c.h.b16 %v623
    %v627 = vpack.c.b16 %v625, %v625
    %v628 = vpack.c.b16 %v626, %v626
    %631 = vst [vmem:[#allocation3 + $0x24] sm:$0xf] %v627
    %632 = vst [vmem:[#allocation3 + $0x34] sm:$0xf] %v628
    %v633 = vld [vmem:[%s119 + $0x2] sm:$0xff]
    %v634 = vld [vmem:[%s119 + $0xa] sm:$0xff]
    %v635 = vpack.c.bf16 %v634, %v633
    %v637 = vunpack.c.l.b16 %v635
    %v638 = vunpack.c.h.b16 %v635
    %v639 = vpack.c.b16 %v637, %v637
    %v640 = vpack.c.b16 %v638, %v638
    %643 = vst [vmem:[#allocation3 + $0x28] sm:$0xf] %v639
    %644 = vst [vmem:[#allocation3 + $0x38] sm:$0xf] %v640
    %v645 = vld [vmem:[#allocation3] sm:$0xff]
    %v646 = vld [vmem:[#allocation3 + $0x8] sm:$0xff]
    %v647 = vld [vmem:[#allocation3 + $0x10] sm:$0xff]
    %v648 = vld [vmem:[#allocation3 + $0x18] sm:$0xff]
    %v649 = vld [vmem:[#allocation3 + $0x20] sm:$0xff]
    %v650 = vld [vmem:[#allocation3 + $0x28] sm:$0xff]
    %v651 = vld [vmem:[#allocation3 + $0x30] sm:$0xff]
    %v652 = vld [vmem:[#allocation3 + $0x38] sm:$0xff]
    %v653 = vld [vmem:[#allocation9] sm:$0xf]
    %v654 = vld [vmem:[#allocation9 + $0x4] sm:$0xf]
    %v655 = vld [vmem:[#allocation9 + $0x8] sm:$0xf]
    %v656 = vld [vmem:[#allocation9 + $0xc] sm:$0xf]
    %v657 = vld [vmem:[#allocation9 + $0x10] sm:$0xf]
    %v658 = vld [vmem:[#allocation9 + $0x14] sm:$0xf]
    %v659 = vld [vmem:[#allocation9 + $0x18] sm:$0xf]
    %v660 = vld [vmem:[#allocation9 + $0x1c] sm:$0xf]
    %v661 = vld [vmem:[#allocation9 + $0x20] sm:$0xf]
    %v662 = vld [vmem:[#allocation9 + $0x24] sm:$0xf]
    %v663 = vld [vmem:[#allocation9 + $0x28] sm:$0xf]
    %v664 = vld [vmem:[#allocation9 + $0x2c] sm:$0xf]
    %v665 = vld [vmem:[#allocation9 + $0x30] sm:$0xf]
    %v666 = vld [vmem:[#allocation9 + $0x34] sm:$0xf]
    %v667 = vld [vmem:[#allocation9 + $0x38] sm:$0xf]
    %v668 = vld [vmem:[#allocation9 + $0x3c] sm:$0xf]
    %v669 = vld [vmem:[#allocation9 + $0x40] sm:$0xf]
    %v670 = vld [vmem:[#allocation9 + $0x44] sm:$0xf]
    %v671 = vld [vmem:[#allocation9 + $0x48] sm:$0xf]
    %v672 = vld [vmem:[#allocation9 + $0x4c] sm:$0xf]
    %v673 = vld [vmem:[#allocation9 + $0x50] sm:$0xf]
    %v674 = vld [vmem:[#allocation9 + $0x54] sm:$0xf]
    %v675 = vld [vmem:[#allocation9 + $0x58] sm:$0xf]
    %v676 = vld [vmem:[#allocation9 + $0x5c] sm:$0xf]
    %v677 = vld [vmem:[#allocation9 + $0x60] sm:$0xf]
    %v678 = vld [vmem:[#allocation9 + $0x64] sm:$0xf]
    %v679 = vld [vmem:[#allocation9 + $0x68] sm:$0xf]
    %v680 = vld [vmem:[#allocation9 + $0x6c] sm:$0xf]
    %v681 = vld [vmem:[#allocation9 + $0x70] sm:$0xf]
    %v682 = vld [vmem:[#allocation9 + $0x74] sm:$0xf]
    %v683 = vld [vmem:[#allocation9 + $0x78] sm:$0xf]
    %v684 = vld [vmem:[#allocation9 + $0x7c] sm:$0xf]
    %v685 = vld [vmem:[#allocation9 + $0x80] sm:$0xf]
    %v686 = vld [vmem:[#allocation9 + $0x84] sm:$0xf]
    %v687 = vld [vmem:[#allocation9 + $0x88] sm:$0xf]
    %v688 = vld [vmem:[#allocation9 + $0x8c] sm:$0xf]
    %v689 = vld [vmem:[#allocation9 + $0x90] sm:$0xf]
    %v690 = vld [vmem:[#allocation9 + $0x94] sm:$0xf]
    %v691 = vld [vmem:[#allocation9 + $0x98] sm:$0xf]
    %v692 = vld [vmem:[#allocation9 + $0x9c] sm:$0xf]
    %v693 = vld [vmem:[#allocation9 + $0xa0] sm:$0xf]
    %v694 = vld [vmem:[#allocation9 + $0xa4] sm:$0xf]
    %v695 = vld [vmem:[#allocation9 + $0xa8] sm:$0xf]
    %v696 = vld [vmem:[#allocation9 + $0xac] sm:$0xf]
    %v697 = vld [vmem:[#allocation9 + $0xb0] sm:$0xf]
    %v698 = vld [vmem:[#allocation9 + $0xb4] sm:$0xf]
    %v699 = vld [vmem:[#allocation9 + $0xb8] sm:$0xf]
    %v700 = vld [vmem:[#allocation9 + $0xbc] sm:$0xf]
    %v701 = vld [vmem:[#allocation9 + $0xc0] sm:$0xf]
    %v702 = vld [vmem:[#allocation9 + $0xc4] sm:$0xf]
    %v703 = vld [vmem:[#allocation9 + $0xc8] sm:$0xf]
    %v704 = vld [vmem:[#allocation9 + $0xcc] sm:$0xf]
    %v705 = vld [vmem:[#allocation9 + $0xd0] sm:$0xf]
    %v706 = vld [vmem:[#allocation9 + $0xd4] sm:$0xf]
    %v707 = vld [vmem:[#allocation9 + $0xd8] sm:$0xf]
    %v708 = vld [vmem:[#allocation9 + $0xdc] sm:$0xf]
    %v709 = vld [vmem:[#allocation9 + $0xe0] sm:$0xf]
    %v710 = vld [vmem:[#allocation9 + $0xe4] sm:$0xf]
    %v711 = vld [vmem:[#allocation9 + $0xe8] sm:$0xf]
    %v712 = vld [vmem:[#allocation9 + $0xec] sm:$0xf]
    %v713 = vld [vmem:[#allocation9 + $0xf0] sm:$0xf]
    %v714 = vld [vmem:[#allocation9 + $0xf4] sm:$0xf]
    %v715 = vld [vmem:[#allocation9 + $0xf8] sm:$0xf]
    %v716 = vld [vmem:[#allocation9 + $0xfc] sm:$0xf]
    %v717 = vld [vmem:[%s4] sm:$0x1]
    %v719 = vlaneseq
    %v720 = vshrl.u32 %v719, 7
    %v721 = vsub.s32 0, %v720
    %v722 = vrot.slane %v717, %v721
    %v732 = vunpack.c.l.b16 %v645
    %v733 = vunpack.c.h.b16 %v645
    %v734 = vunpack.c.l.b16 %v646
    %v735 = vunpack.c.h.b16 %v646
    %v736 = vunpack.c.l.b16 %v647
    %v737 = vunpack.c.h.b16 %v647
    %v738 = vunpack.c.l.b16 %v648
    %v739 = vunpack.c.h.b16 %v648
    %v740 = vunpack.c.l.b16 %v649
    %v741 = vunpack.c.h.b16 %v649
    %v742 = vunpack.c.l.b16 %v650
    %v743 = vunpack.c.h.b16 %v650
    %v744 = vunpack.c.l.b16 %v651
    %v745 = vunpack.c.h.b16 %v651
    %v746 = vunpack.c.l.b16 %v652
    %v747 = vunpack.c.h.b16 %v652
    %v748 = vpack.c.b16 %v736, %v732
    %v749 = vpack.c.b16 %v737, %v733
    %v750 = vpack.c.b16 %v738, %v734
    %v751 = vpack.c.b16 %v739, %v735
    %v752 = vpack.c.b16 %v744, %v740
    %v753 = vpack.c.b16 %v745, %v741
    %v754 = vpack.c.b16 %v746, %v742
    %v755 = vpack.c.b16 %v747, %v743
    %v828 = vunpack.c.l.b16 %v653
    %v829 = vunpack.c.l.b16 %v654
    %v830 = vunpack.c.l.b16 %v655
    %v831 = vunpack.c.l.b16 %v656
    %v832 = vunpack.c.l.b16 %v657
    %v833 = vunpack.c.l.b16 %v658
    %v834 = vunpack.c.l.b16 %v659
    %v835 = vunpack.c.l.b16 %v660
    %v836 = vunpack.c.l.b16 %v661
    %v837 = vunpack.c.l.b16 %v662
    %v838 = vunpack.c.l.b16 %v663
    %v839 = vunpack.c.l.b16 %v664
    %v840 = vunpack.c.l.b16 %v665
    %v841 = vunpack.c.l.b16 %v666
    %v842 = vunpack.c.l.b16 %v667
    %v843 = vunpack.c.l.b16 %v668
    %v844 = vunpack.c.l.b16 %v669
    %v845 = vunpack.c.l.b16 %v670
    %v846 = vunpack.c.l.b16 %v671
    %v847 = vunpack.c.l.b16 %v672
    %v848 = vunpack.c.l.b16 %v673
    %v849 = vunpack.c.l.b16 %v674
    %v850 = vunpack.c.l.b16 %v675
    %v851 = vunpack.c.l.b16 %v676
    %v852 = vunpack.c.l.b16 %v677
    %v853 = vunpack.c.l.b16 %v678
    %v854 = vunpack.c.l.b16 %v679
    %v855 = vunpack.c.l.b16 %v680
    %v856 = vunpack.c.l.b16 %v681
    %v857 = vunpack.c.l.b16 %v682
    %v858 = vunpack.c.l.b16 %v683
    %v859 = vunpack.c.l.b16 %v684
    %v860 = vunpack.c.l.b16 %v685
    %v861 = vunpack.c.l.b16 %v686
    %v862 = vunpack.c.l.b16 %v687
    %v863 = vunpack.c.l.b16 %v688
    %v864 = vunpack.c.l.b16 %v689
    %v865 = vunpack.c.l.b16 %v690
    %v866 = vunpack.c.l.b16 %v691
    %v867 = vunpack.c.l.b16 %v692
    %v868 = vunpack.c.l.b16 %v693
    %v869 = vunpack.c.l.b16 %v694
    %v870 = vunpack.c.l.b16 %v695
    %v871 = vunpack.c.l.b16 %v696
    %v872 = vunpack.c.l.b16 %v697
    %v873 = vunpack.c.l.b16 %v698
    %v874 = vunpack.c.l.b16 %v699
    %v875 = vunpack.c.l.b16 %v700
    %v876 = vunpack.c.l.b16 %v701
    %v877 = vunpack.c.l.b16 %v702
    %v878 = vunpack.c.l.b16 %v703
    %v879 = vunpack.c.l.b16 %v704
    %v880 = vunpack.c.l.b16 %v705
    %v881 = vunpack.c.l.b16 %v706
    %v882 = vunpack.c.l.b16 %v707
    %v883 = vunpack.c.l.b16 %v708
    %v884 = vunpack.c.l.b16 %v709
    %v885 = vunpack.c.l.b16 %v710
    %v886 = vunpack.c.l.b16 %v711
    %v887 = vunpack.c.l.b16 %v712
    %v888 = vunpack.c.l.b16 %v713
    %v889 = vunpack.c.l.b16 %v714
    %v890 = vunpack.c.l.b16 %v715
    %v891 = vunpack.c.l.b16 %v716
    %v892 = vpack.c.b16 %v829, %v828
    %v893 = vpack.c.b16 %v831, %v830
    %v894 = vpack.c.b16 %v833, %v832
    %v895 = vpack.c.b16 %v835, %v834
    %v896 = vpack.c.b16 %v837, %v836
    %v897 = vpack.c.b16 %v839, %v838
    %v898 = vpack.c.b16 %v841, %v840
    %v899 = vpack.c.b16 %v843, %v842
    %v900 = vpack.c.b16 %v845, %v844
    %v901 = vpack.c.b16 %v847, %v846
    %v902 = vpack.c.b16 %v849, %v848
    %v903 = vpack.c.b16 %v851, %v850
    %v904 = vpack.c.b16 %v853, %v852
    %v905 = vpack.c.b16 %v855, %v854
    %v906 = vpack.c.b16 %v857, %v856
    %v907 = vpack.c.b16 %v859, %v858
    %v908 = vpack.c.b16 %v861, %v860
    %v909 = vpack.c.b16 %v863, %v862
    %v910 = vpack.c.b16 %v865, %v864
    %v911 = vpack.c.b16 %v867, %v866
    %v912 = vpack.c.b16 %v869, %v868
    %v913 = vpack.c.b16 %v871, %v870
    %v914 = vpack.c.b16 %v873, %v872
    %v915 = vpack.c.b16 %v875, %v874
    %v916 = vpack.c.b16 %v877, %v876
    %v917 = vpack.c.b16 %v879, %v878
    %v918 = vpack.c.b16 %v881, %v880
    %v919 = vpack.c.b16 %v883, %v882
    %v920 = vpack.c.b16 %v885, %v884
    %v921 = vpack.c.b16 %v887, %v886
    %v922 = vpack.c.b16 %v889, %v888
    %v923 = vpack.c.b16 %v891, %v890
    %956 = vmatprep.subr.bf16.mxu0 0
    %957 = vmatpush1.bf16.msra.mxu0 %v899
    %958 = vmatprep.subr.bf16.mxu0 0
    %959 = vmatpush1.bf16.msra.mxu0 %v898
    %960 = vmatprep.subr.bf16.mxu0 0
    %961 = vmatpush1.bf16.msra.mxu0 %v897
    %962 = vmatprep.subr.bf16.mxu0 0
    %963 = vmatpush1.bf16.msra.mxu0 %v896
    %964 = vmatprep.subr.bf16.mxu0 0
    %965 = vmatpush1.bf16.msra.mxu0 %v895
    %966 = vmatprep.subr.bf16.mxu0 0
    %967 = vmatpush1.bf16.msra.mxu0 %v894
    %968 = vmatprep.subr.bf16.mxu0 0
    %969 = vmatpush1.bf16.msra.mxu0 %v893
    %970 = vmatprep.subr.bf16.mxu0 0
    %971 = vmatpush1.bf16.msra.mxu0 %v892
    %972 = vmatprep.subr.bf16.mxu0 0
    %973 = vmatpush2.bf16.msra.mxu0 %v907
    %974 = vmatprep.subr.bf16.mxu0 0
    %975 = vmatpush2.bf16.msra.mxu0 %v906
    %976 = vmatprep.subr.bf16.mxu0 0
    %977 = vmatpush2.bf16.msra.mxu0 %v905
    %978 = vmatprep.subr.bf16.mxu0 0
    %979 = vmatpush2.bf16.msra.mxu0 %v904
    %980 = vmatprep.subr.bf16.mxu0 0
    %981 = vmatpush2.bf16.msra.mxu0 %v903
    %982 = vmatprep.subr.bf16.mxu0 0
    %983 = vmatpush2.bf16.msra.mxu0 %v902
    %984 = vmatprep.subr.bf16.mxu0 0
    %985 = vmatpush2.bf16.msra.mxu0 %v901
    %986 = vmatprep.subr.bf16.mxu0 0
    %987 = vmatpush2.bf16.msra.mxu0 %v900
    %988 = vmatprep.mubr.bf16.mxu0 %v749
    %989 = vmatmul.mubr.bf16.gmra.mxu0 %v748
    %v990 = vpop.f32.mrf.mxu0
    %v991 = vadd.f32 %v722, %v990
    %v992 = vpop.f32.mrf.mxu0
    %v993 = vpop.f32.mrf.mxu0
    %v994 = vadd.f32 %v722, %v993
    %v995 = vpop.f32.mrf.mxu0
    %996 = vmatprep.mubr.bf16.mxu0 %v753
    %997 = vmatmul.mubr.bf16.gmra.mxu0 %v752
    %v998 = vpop.f32.mrf.mxu0
    %v999 = vadd.f32 %v722, %v998
    %v1000 = vpop.f32.mrf.mxu0
    %v1001 = vpop.f32.mrf.mxu0
    %v1002 = vadd.f32 %v722, %v1001
    %v1003 = vpop.f32.mrf.mxu0
    %1004 = vdwg.mxu0
    %1005 = vmatprep.subr.bf16.mxu0 0
    %1006 = vmatpush1.bf16.msra.mxu0 %v915
    %1007 = vmatprep.subr.bf16.mxu0 0
    %1008 = vmatpush1.bf16.msra.mxu0 %v914
    %1009 = vmatprep.subr.bf16.mxu0 0
    %1010 = vmatpush1.bf16.msra.mxu0 %v913
    %1011 = vmatprep.subr.bf16.mxu0 0
    %1012 = vmatpush1.bf16.msra.mxu0 %v912
    %1013 = vmatprep.subr.bf16.mxu0 0
    %1014 = vmatpush1.bf16.msra.mxu0 %v911
    %1015 = vmatprep.subr.bf16.mxu0 0
    %1016 = vmatpush1.bf16.msra.mxu0 %v910
    %1017 = vmatprep.subr.bf16.mxu0 0
    %1018 = vmatpush1.bf16.msra.mxu0 %v909
    %1019 = vmatprep.subr.bf16.mxu0 0
    %1020 = vmatpush1.bf16.msra.mxu0 %v908
    %1021 = vmatprep.subr.bf16.mxu0 0
    %1022 = vmatpush2.bf16.msra.mxu0 %v923
    %1023 = vmatprep.subr.bf16.mxu0 0
    %1024 = vmatpush2.bf16.msra.mxu0 %v922
    %1025 = vmatprep.subr.bf16.mxu0 0
    %1026 = vmatpush2.bf16.msra.mxu0 %v921
    %1027 = vmatprep.subr.bf16.mxu0 0
    %1028 = vmatpush2.bf16.msra.mxu0 %v920
    %1029 = vmatprep.subr.bf16.mxu0 0
    %1030 = vmatpush2.bf16.msra.mxu0 %v919
    %1031 = vmatprep.subr.bf16.mxu0 0
    %1032 = vmatpush2.bf16.msra.mxu0 %v918
    %1033 = vmatprep.subr.bf16.mxu0 0
    %1034 = vmatpush2.bf16.msra.mxu0 %v917
    %1035 = vmatprep.subr.bf16.mxu0 0
    %1036 = vmatpush2.bf16.msra.mxu0 %v916
    %1037 = vmatprep.mubr.bf16.mxu0 %v751
    %1038 = vmatmul.mubr.bf16.gmra.mxu0 %v750
    %v1039 = vpop.f32.mrf.mxu0
    %v1040 = vadd.f32 %v991, %v1039
    %v1041 = vpop.f32.mrf.mxu0
    %v1042 = vpop.f32.mrf.mxu0
    %v1043 = vadd.f32 %v994, %v1042
    %v1044 = vpop.f32.mrf.mxu0
    %1045 = vmatprep.mubr.bf16.mxu0 %v755
    %1046 = vmatmul.mubr.bf16.gmra.mxu0 %v754
    %v1047 = vpop.f32.mrf.mxu0
    %v1048 = vadd.f32 %v999, %v1047
    %v1049 = vpop.f32.mrf.mxu0
    %v1050 = vpop.f32.mrf.mxu0
    %v1051 = vadd.f32 %v1002, %v1050
    %v1052 = vpop.f32.mrf.mxu0
    %1053 = vdwg.mxu0
    %v1054 = vmax.f32 %v1040, 0.0
    %v1055 = vmax.f32 %v1043, 0.0
    %v1056 = vmax.f32 %v1048, 0.0
    %v1057 = vmax.f32 %v1051, 0.0
    %v1058 = vpack.c.bf16 %v1055, %v1054
    %v1059 = vpack.c.bf16 %v1057, %v1056
    %v1062 = vunpack.c.l.b16 %v1058
    %v1063 = vunpack.c.h.b16 %v1058
    %v1064 = vunpack.c.l.b16 %v1059
    %v1065 = vunpack.c.h.b16 %v1059
    %v1066 = vpack.c.b16 %v1062, %v1062
    %v1067 = vpack.c.b16 %v1063, %v1063
    %v1068 = vpack.c.b16 %v1064, %v1064
    %v1069 = vpack.c.b16 %v1065, %v1065
    %1074 = vst [vmem:[#allocation10] sm:$0xf] %v1066
    %1075 = vst [vmem:[#allocation10 + $0x4] sm:$0xf] %v1067
    %1076 = vst [vmem:[#allocation10 + $0x8] sm:$0xf] %v1068
    %1077 = vst [vmem:[#allocation10 + $0xc] sm:$0xf] %v1069
    // Predicated region
    $region34: #{tpu_custom_call.1} parent=1 // pred_check
      _
    $region35: #{tpu_custom_call.1} parent=1 // pred_check_branch
      %1079 = sbr.rel (0) target = $region37
    $region36: #{tpu_custom_call.1} parent=1 // pred_region
      %s1081 = ssub.s32 256, 256
      %1082 = vsyncadd [#allocation6], %s1081
      %s1083 = sshll.u32 [#allocation10], 4
      %s1084 = int_to_ptr.vmem [resolvable:$true] %s1083
      %1089 = dma.vmem_to_hbm [thread:$0]  %s1084, 256, %s5, [#allocation6], 64, 64, 4
    $region37: #{tpu_custom_call.1} parent=1 // pred_fallthru
      _
    // Predicated region
    $region38: #{tpu_custom_call.1} parent=1 // pred_check
      _
    $region39: #{tpu_custom_call.1} parent=1 // pred_check_branch
      %1091 = sbr.rel (0) target = $region41
    $region40: #{tpu_custom_call.1} parent=1 // pred_region
      %1092 = dma.done [#allocation6], 256
    $region41: #{tpu_custom_call.1} parent=1 // pred_fallthru
      _
    %1093 = vsyncpa [#allocation5], 1
    %1094 = vsyncpa [#allocation8], 1
    %1095 = vsyncpa [#allocation6], 1

</llo_original>
